<compile_context>
chip_gen: v5e
topology: v5e:2x2
jax: 0.10.0
libtpu: 0.0.40
codegen_flags: <defaults>
</compile_context>

<pallas_src>
import math
import jax
import jax.numpy as jnp
from jax.experimental import pallas as pl
from jax.experimental.pallas import tpu as pltpu


def _round_up(n, m):
    return ((n + m - 1) // m) * m


def _quanv_kernel(p_ref, wc_ref, ws_ref, b_ref, o_ref):
    # p_ref : (CKK, nt) f32 VMEM -- im2col patch block, lanes = output positions
    # wc_ref: (F, CKK)  f32 VMEM -- cos(w)/KK, tiled over input channels
    # ws_ref: (F, CKK)  f32 VMEM -- -sin(w)/KK, tiled over input channels
    # b_ref : (F, 1)    f32 VMEM -- per-filter bias
    # o_ref : (F, nt)   f32 VMEM
    p = p_ref[...]
    # cos(x + w) = cos(w)cos(x) - sin(w)sin(x): only two transcendental passes
    # over the patch block (independent of F); the C*KK reduction for every
    # filter runs on the otherwise-idle MXU (tiny matmul -- intentionally so,
    # MXU utilization is irrelevant here, HBM/EUP are the critical units).
    acc = jnp.dot(wc_ref[...], jnp.cos(p), preferred_element_type=jnp.float32)
    acc = acc + jnp.dot(ws_ref[...], jnp.sin(p),
                        preferred_element_type=jnp.float32)
    # single lane-dense store of the full (F, nt) tile + broadcast bias add
    o_ref[...] = acc + b_ref[...]


def _choose_lane_tile(n_lanes, ckk, f, *, lane_block, min_grid,
                      vmem_budget=24 * 1024 * 1024):
    """Lane tile: multiple of 128, <= lane_block, VMEM-budgeted, and (when
    requested) small enough to leave >= min_grid steps on the parallel lane
    axis so work can shard across v7x's two TensorCores."""
    # bytes per lane simultaneously resident in VMEM:
    #   patch block (x2 double buffer) + cos/sin temporaries + output (x2)
    per_lane = (2 * ckk + 2 * ckk + 2 * f) * 4
    vmem_cap = max(128, (vmem_budget // per_lane) // 128 * 128)
    nt = _round_up(n_lanes, 128)
    nt = min(nt, lane_block, vmem_cap)
    if min_grid > 1:
        nt = min(nt, max(128, _round_up(-(-n_lanes // min_grid), 128)))
    return nt


def quanvolution2d(x, weights, bias, kernel_size, stride, *,
                   lane_block=4096, min_lane_tiles=4, batch_grid_min_l=256):
    """x: (B, C, H, W) float32 (NCHW, like the PyTorch module).

    weights: (F, KK) rotation angles of the surrogate quantum filters.
    bias:    (F,)    per-filter bias.
    Returns (B, F, h_iter, w_iter).
    """
    B, C, H, W = x.shape
    kh, kw = kernel_size
    sh, sw = stride
    h_iter = (H - kh) // sh + 1
    w_iter = (W - kw) // sw + 1
    L = h_iter * w_iter
    KK = kh * kw
    CKK = C * KK
    F = weights.shape[0]

    # Tiny trig-identity weight matrices (host/wrapper side). Patch-slab row
    # c*KK + k pairs with weights[f, k] (C major, KK minor).
    inv_kk = 1.0 / KK
    w_cos = jnp.tile(jnp.cos(weights) * inv_kk, (1, C)).astype(jnp.float32)    # (F, CKK)
    w_msin = jnp.tile(-jnp.sin(weights) * inv_kk, (1, C)).astype(jnp.float32)  # (F, CKK)
    b2 = bias.reshape(F, 1).astype(jnp.float32)

    # torch.nn.functional.unfold equivalent: per-(kh,kw) strided slices,
    # kernel-element ordering kh-major / kw-minor, identical to torch unfold.
    # TODO(synk): for overlapping strides (stride < kernel) fuse the unfold
    # into the kernel (DMA an x tile, build shifted views in VMEM) instead of
    # writing a KK-times-larger im2col slab through HBM; for stride == kernel
    # (this module's typical config) the unfold is traffic-neutral.
    def _slices():
        out = []
        for ikh in range(kh):
            for ikw in range(kw):
                out.append(x[:, :,
                             ikh:ikh + sh * (h_iter - 1) + 1:sh,
                             ikw:ikw + sw * (w_iter - 1) + 1:sw])  # (B,C,h_it,w_it)
        return out

    vmem_limit = 32 * 1024 * 1024

    if L >= batch_grid_min_l:
        # ---- per-batch grid path (large per-image L) -----------------------
        # patches stay (B, CKK, L): no input transpose, and the output is
        # produced directly in (B, F, L) layout -> free reshape to (B,F,h,w).
        nt = _choose_lane_tile(L, CKK, F, lane_block=lane_block,
                               min_grid=1 if B > 1 else min_lane_tiles)
        l_pad = _round_up(L, nt)
        patches = (jnp.stack([sl.reshape(B, C, L) for sl in _slices()], axis=2)
                      .reshape(B, CKK, L).astype(jnp.float32))       # (B, CKK, L)
        if l_pad != L:
            # padded lanes produce benign cos(0)-terms, sliced off below
            patches = jnp.pad(patches, ((0, 0), (0, 0), (0, l_pad - L)))

        out = pl.pallas_call(
            _quanv_kernel,
            out_shape=jax.ShapeDtypeStruct((B, F, l_pad), jnp.float32),
            grid_spec=pltpu.PrefetchScalarGridSpec(
                num_scalar_prefetch=0,
                grid=(B, l_pad // nt),
                in_specs=[
                    # leading batch dim squeezed -> kernel sees (CKK, nt)
                    pl.BlockSpec((None, CKK, nt), lambda b, j: (b, 0, j)),
                    pl.BlockSpec((F, CKK), lambda b, j: (0, 0)),
                    pl.BlockSpec((F, CKK), lambda b, j: (0, 0)),
                    pl.BlockSpec((F, 1), lambda b, j: (0, 0)),
                ],
                out_specs=pl.BlockSpec((None, F, nt), lambda b, j: (b, 0, j)),
            ),
            compiler_params=pltpu.CompilerParams(
                dimension_semantics=("parallel", "parallel"),
                vmem_limit_bytes=vmem_limit,
            ),
        )(patches, w_cos, w_msin, b2)
        out = out[:, :, :L]                         # no-op when l_pad == L
        return out.reshape(B, F, h_iter, w_iter)

    # ---- batch-folded lane path (small per-image L) ------------------------
    # Fold batch into the lane axis so stores stay >= 128 lanes dense. The
    # slab is built in a single fused pass: per-slice transpose to (C, B*L),
    # stack on axis=1, free reshape -> (CKK, B*L); no full-slab transpose.
    N = B * L
    nt = _choose_lane_tile(N, CKK, F, lane_block=lane_block,
                           min_grid=min_lane_tiles)
    n_pad = _round_up(N, nt)
    patches = (jnp.stack([sl.transpose(1, 0, 2, 3).reshape(C, N)
                          for sl in _slices()], axis=1)
                  .reshape(CKK, N).astype(jnp.float32))              # (CKK, B*L)
    if n_pad != N:
        patches = jnp.pad(patches, ((0, 0), (0, n_pad - N)))

    out = pl.pallas_call(
        _quanv_kernel,
        out_shape=jax.ShapeDtypeStruct((F, n_pad), jnp.float32),
        grid_spec=pltpu.PrefetchScalarGridSpec(
            num_scalar_prefetch=0,
            grid=(n_pad // nt,),
            in_specs=[
                pl.BlockSpec((CKK, nt), lambda i: (0, i)),
                pl.BlockSpec((F, CKK), lambda i: (0, 0)),
                pl.BlockSpec((F, CKK), lambda i: (0, 0)),
                pl.BlockSpec((F, 1), lambda i: (0, 0)),
            ],
            out_specs=pl.BlockSpec((F, nt), lambda i: (0, i)),
        ),
        compiler_params=pltpu.CompilerParams(
            dimension_semantics=("parallel",),
            vmem_limit_bytes=vmem_limit,
        ),
    )(patches, w_cos, w_msin, b2)
    # output arrays here are tiny (F*B*L); the transpose cost is negligible
    out = out[:, :N].reshape(F, B, L).transpose(1, 0, 2)             # (B, F, L)
    return out.reshape(B, F, h_iter, w_iter)


def _reference(x, weights, bias, kernel_size, stride):
    """Pure-JAX reference mirroring the PyTorch forward (with surrogate filter)."""
    B, C, H, W = x.shape
    kh, kw = kernel_size
    sh, sw = stride
    h_iter = (H - kh) // sh + 1
    w_iter = (W - kw) // sw + 1
    L = h_iter * w_iter
    F = weights.shape[0]
    cols = []
    for ikh in range(kh):
        for ikw in range(kw):
            sl = x[:, :,
                   ikh:ikh + sh * (h_iter - 1) + 1:sh,
                   ikw:ikw + sw * (w_iter - 1) + 1:sw]
            cols.append(sl.reshape(B, C, L))
    patches = jnp.stack(cols, axis=2)                                # (B, C, KK, L)
    # filter f on patch p: mean_k cos(p_k + w_fk); sum over channels; add bias
    vals = jnp.cos(patches[:, None] + weights[None, :, None, :, None])  # (B,F,C,KK,L)
    out = vals.mean(axis=3).sum(axis=2) + bias[None, :, None]           # (B,F,L)
    return out.reshape(B, F, h_iter, w_iter)


if __name__ == "__main__":
    key = jax.random.PRNGKey(0)
    k1x, k1w, k2x, k2w = jax.random.split(key, 4)

    kernel_size = (2, 2)
    stride = (2, 2)
    n_filters = 2
    KK = kernel_size[0] * kernel_size[1]
    bias = jnp.ones((n_filters,), dtype=jnp.float32) * 0.1   # nn.Parameter(ones*0.1)

    # Case 1: small per-image spatial output (L = 64) -> batch-folded lane path.
    B, C, H, W = 2, 4, 16, 16
    x1 = jax.random.uniform(k1x, (B, C, H, W), dtype=jnp.float32)
    w1 = jax.random.uniform(k1w, (n_filters, KK), dtype=jnp.float32,
                            minval=0.0, maxval=2.0 * math.pi)
    out1 = jax.block_until_ready(quanvolution2d(x1, w1, bias, kernel_size, stride))
    ref1 = _reference(x1, w1, bias, kernel_size, stride)
    assert out1.shape == (B, n_filters, 8, 8), out1.shape
    assert jnp.allclose(out1, ref1, atol=1e-5, rtol=1e-5), "mismatch (small-L path)"

    # Case 2: larger per-image spatial output (L = 1024) -> per-batch grid path
    # (output produced directly in (B, F, h, w)-compatible layout).
    B2, C2, H2, W2 = 2, 3, 64, 64
    x2 = jax.random.uniform(k2x, (B2, C2, H2, W2), dtype=jnp.float32)
    w2 = jax.random.uniform(k2w, (n_filters, KK), dtype=jnp.float32,
                            minval=0.0, maxval=2.0 * math.pi)
    out2 = jax.block_until_ready(quanvolution2d(x2, w2, bias, kernel_size, stride))
    ref2 = _reference(x2, w2, bias, kernel_size, stride)
    assert out2.shape == (B2, n_filters, 32, 32), out2.shape
    assert jnp.allclose(out2, ref2, atol=1e-5, rtol=1e-5), "mismatch (large-L path)"

    print("KERNEL_OK")
</pallas_src>

<mosaic_0001>
module attributes {stable_mosaic.version = 11 : i64} {
  func.func @_quanv_kernel(%arg0: i32, %arg1: memref<16x128xf32, #tpu.memory_space<vmem>>, %arg2: memref<2x16xf32, #tpu.memory_space<vmem>>, %arg3: memref<2x16xf32, #tpu.memory_space<vmem>>, %arg4: memref<2x1xf32, #tpu.memory_space<vmem>>, %arg5: memref<2x128xf32, #tpu.memory_space<vmem>>) attributes {dimension_semantics = [#tpu.dimension_semantics<parallel>], iteration_bounds = array<i64: 1>, scalar_prefetch = 0 : i64, scratch_operands = 0 : i64, tpu.core_type = #tpu.core_type<tc>, window_params = [{transform_indices = @transform_0, window_bounds = array<i64: 16, 128>}, {pipeline_mode = #tpu.pipeline_mode<synchronous>, transform_indices = @transform_1, window_bounds = array<i64: 2, 16>}, {pipeline_mode = #tpu.pipeline_mode<synchronous>, transform_indices = @transform_2, window_bounds = array<i64: 2, 16>}, {pipeline_mode = #tpu.pipeline_mode<synchronous>, transform_indices = @transform_3, window_bounds = array<i64: 2, 1>}, {transform_indices = @transform_4, window_bounds = array<i64: 2, 128>}]} {
    %c0 = arith.constant 0 : index
    %c0_0 = arith.constant 0 : index
    %0 = vector.load %arg1[%c0, %c0_0] : memref<16x128xf32, #tpu.memory_space<vmem>>, vector<16x128xf32>
    %c0_1 = arith.constant 0 : index
    %c0_2 = arith.constant 0 : index
    %1 = vector.load %arg2[%c0_1, %c0_2] : memref<2x16xf32, #tpu.memory_space<vmem>>, vector<2x16xf32>
    %2 = math.cos %0 : vector<16x128xf32>
    %cst = arith.constant dense<0.000000e+00> : vector<2x128xf32>
    %3 = tpu.matmul %1, %2, %cst {dimension_numbers = #tpu.dot_dimension_numbers<[1], [0], [0], [1], [0, 0, 1, 1], [], []>} : vector<2x16xf32>, vector<16x128xf32>, vector<2x128xf32> -> vector<2x128xf32>
    %c0_3 = arith.constant 0 : index
    %c0_4 = arith.constant 0 : index
    %4 = vector.load %arg3[%c0_3, %c0_4] : memref<2x16xf32, #tpu.memory_space<vmem>>, vector<2x16xf32>
    %5 = math.sin %0 : vector<16x128xf32>
    %cst_5 = arith.constant dense<0.000000e+00> : vector<2x128xf32>
    %6 = tpu.matmul %4, %5, %cst_5 {dimension_numbers = #tpu.dot_dimension_numbers<[1], [0], [0], [1], [0, 0, 1, 1], [], []>} : vector<2x16xf32>, vector<16x128xf32>, vector<2x128xf32> -> vector<2x128xf32>
    %7 = arith.addf %3, %6 : vector<2x128xf32>
    %c0_6 = arith.constant 0 : index
    %c0_7 = arith.constant 0 : index
    %8 = vector.load %arg4[%c0_6, %c0_7] : memref<2x1xf32, #tpu.memory_space<vmem>>, vector<2x1xf32>
    %9 = vector.broadcast %8 : vector<2x1xf32> to vector<2x128xf32>
    %10 = arith.addf %7, %9 : vector<2x128xf32>
    %c0_8 = arith.constant 0 : index
    %c0_9 = arith.constant 0 : index
    %11 = vector.load %arg5[%c0_8, %c0_9] : memref<2x128xf32, #tpu.memory_space<vmem>>, vector<2x128xf32>
    tpu.vector_store %arg5[%c0_8, %c0_9], %10 {strides = array<i32>} : memref<2x128xf32, #tpu.memory_space<vmem>>, vector<2x128xf32>,
    return
  }
  func.func @transform_0(%arg0: i32) -> (i32, i32) {
    %c0_i32 = arith.constant 0 : i32
    %c0_i32_0 = arith.constant 0 : i32
    return %c0_i32, %arg0 : i32, i32
  }
  func.func @transform_1(%arg0: i32) -> (i32, i32) {
    %c0_i32 = arith.constant 0 : i32
    %c0_i32_0 = arith.constant 0 : i32
    %c0_i32_1 = arith.constant 0 : i32
    return %c0_i32, %c0_i32_0 : i32, i32
  }
  func.func @transform_2(%arg0: i32) -> (i32, i32) {
    %c0_i32 = arith.constant 0 : i32
    %c0_i32_0 = arith.constant 0 : i32
    %c0_i32_1 = arith.constant 0 : i32
    return %c0_i32, %c0_i32_0 : i32, i32
  }
  func.func @transform_3(%arg0: i32) -> (i32, i32) {
    %c0_i32 = arith.constant 0 : i32
    %c0_i32_0 = arith.constant 0 : i32
    %c0_i32_1 = arith.constant 0 : i32
    return %c0_i32, %c0_i32_0 : i32, i32
  }
  func.func @transform_4(%arg0: i32) -> (i32, i32) {
    %c0_i32 = arith.constant 0 : i32
    %c0_i32_0 = arith.constant 0 : i32
    return %c0_i32, %arg0 : i32, i32
  }
}

</mosaic_0001>

<llo_original>
// kernel: tpu_custom_call.1
$region0: #{tpu_custom_call.1}
  #allocation0 [shape = 'u32[]', space=smem, size = 0x4, offset = 0x4, fixed_abs, tag = 'smem constant byte address 0x4 - core index']
  #allocation1 [shape = 'u32[72,128]{1,0:T(1,128)}', space=vmem, size = 0x9000, scoped, tag = 'internal scratch']
  %s0 = inlined_call_operand.hbm [shape: f32[16,128], index: 0, kind: input, shape index: {}]
  %s1 = inlined_call_operand.vmem [shape: f32[2,16], index: 1, kind: input, shape index: {}]
  %s2 = inlined_call_operand.hbm [shape: f32[2,16], index: 2, kind: input, shape index: {}]
  %s3 = inlined_call_operand.vmem [shape: f32[2,1], index: 3, kind: input, shape index: {}]
  %s4 = inlined_call_operand.hbm [shape: f32[2,128], index: 4, kind: output, shape index: {}]
  %s5 = sld [smem:[#allocation0]]
  $region34: #{tpu_custom_call.1} parent=0
    _
  %s7 = ssub.s32 1, %s5
  %s8 = scalar_select 0, %s7, %s5
  $region1: #{tpu_custom_call.1} parent=0
    #allocation2 [shape = 'u8[8192]{0}', space=vmem, size = 0x2000, scoped, tag = 'input window, operand 0, single buffered']
    #allocation3 [shape = 's32[1]{0}', space=sflag, size = 0x4, scoped, tag = 'scoped memory for tpu_custom_call.1']
    #allocation4 [shape = 's32[1]{0}', space=sflag, size = 0x4, scoped, tag = 'scoped memory for tpu_custom_call.1']
    #allocation5 [shape = 'u8[1024]{0}', space=vmem, size = 0x400, scoped, tag = 'input window, operand 2, single buffered']
    #allocation6 [shape = 's32[1]{0}', space=sflag, size = 0x4, scoped, tag = 'scoped memory for tpu_custom_call.1']
    #allocation7 [shape = 'u8[1024]{0}', space=vmem, size = 0x400, scoped, tag = 'output window, operand 0, single buffered']
    %9 = vsyncpa [#allocation3], 0
    %10 = vsyncpa [#allocation6], 0
    %11 = vsyncpa [#allocation4], 0
    // Predicated region
    $region2: #{tpu_custom_call.1} parent=1 // pred_check
      _
    $region3: #{tpu_custom_call.1} parent=1 // pred_check_branch
      %13 = sbr.rel (0) target = $region5
    $region4: #{tpu_custom_call.1} parent=1 // pred_region
      %15 = vsyncadd [#allocation3], 0
      %s16 = sshll.u32 %s0, 4
      %s17 = int_to_ptr.hbm [resolvable:$true] %s16
      %s18 = sshll.u32 [#allocation2], 4
      %s19 = int_to_ptr.vmem [resolvable:$true] %s18
      %24 = dma.hbm_to_vmem [thread:$0]  %s17, 256, %s19, [#allocation3], 128, 128, 8
    $region5: #{tpu_custom_call.1} parent=1 // pred_fallthru
      _
    // Predicated region
    $region6: #{tpu_custom_call.1} parent=1 // pred_check
      _
    $region7: #{tpu_custom_call.1} parent=1 // pred_check_branch
      %26 = sbr.rel (0) target = $region9
    $region8: #{tpu_custom_call.1} parent=1 // pred_region
      _
    $region9: #{tpu_custom_call.1} parent=1 // pred_fallthru
      _
    // Predicated region
    $region10: #{tpu_custom_call.1} parent=1 // pred_check
      _
    $region11: #{tpu_custom_call.1} parent=1 // pred_check_branch
      %28 = sbr.rel (0) target = $region13
    $region12: #{tpu_custom_call.1} parent=1 // pred_region
      %30 = vsyncadd [#allocation6], 0
      %s32 = sshll.u32 %s2, 4
      %s33 = int_to_ptr.hbm [resolvable:$true] %s32
      %s34 = sshll.u32 [#allocation5], 4
      %s35 = int_to_ptr.vmem [resolvable:$true] %s34
      %37 = dma.hbm_to_vmem [thread:$0]  %s33, 32, %s35, [#allocation6]
    $region13: #{tpu_custom_call.1} parent=1 // pred_fallthru
      _
    // Predicated region
    $region14: #{tpu_custom_call.1} parent=1 // pred_check
      _
    $region15: #{tpu_custom_call.1} parent=1 // pred_check_branch
      %39 = sbr.rel (0) target = $region17
    $region16: #{tpu_custom_call.1} parent=1 // pred_region
      _
    $region17: #{tpu_custom_call.1} parent=1 // pred_fallthru
      _
    // Predicated region
    $region18: #{tpu_custom_call.1} parent=1 // pred_check
      _
    $region19: #{tpu_custom_call.1} parent=1 // pred_check_branch
      %41 = sbr.rel (0) target = $region21
    $region20: #{tpu_custom_call.1} parent=1 // pred_region
      %43 = dma.done [#allocation3], 256
    $region21: #{tpu_custom_call.1} parent=1 // pred_fallthru
      _
    // Predicated region
    $region22: #{tpu_custom_call.1} parent=1 // pred_check
      _
    $region23: #{tpu_custom_call.1} parent=1 // pred_check_branch
      %45 = sbr.rel (0) target = $region25
    $region24: #{tpu_custom_call.1} parent=1 // pred_region
      %47 = dma.done [#allocation6], 32
    $region25: #{tpu_custom_call.1} parent=1 // pred_fallthru
      _
    %v48 = vld [vmem:[#allocation2] sm:$0xff]
    %v49 = vld [vmem:[#allocation2 + $0x8] sm:$0xff]
    %v50 = vld [vmem:[%s1] sm:$0x3]
    %v51 = vand.u32 2147483647, %v48
    %vm52 = vcmp.le.f32.partialorder %v51, 0.7853982
    %vm53 = vcmp.lt.s32.totalorder %v48, 0
    %v54 = vand.u32 %v48, 2139095040
    %v55 = vshrl.u32 %v54, 23
    %v56 = vsub.s32 %v55, 127
    %v57 = vand.u32 2147483647, %v48
    %v58 = vand.u32 %v57, 8388607
    %v59 = vor.u32 %v58, 8388608
    %v60 = vsub.s32 0, %v59
    %v61 = vadd.s32 %v56, 1
    %vm62 = vcmp.gt.s32.totalorder %v61, 0
    %v63 = vsel %vm62, %v61, 0
    %v64 = vshrl.u32 %v63, 5
    %v65 = vand.u32 %v63, 31
    %v66 = vsub.s32 32, %v65
    %v67 = vshrl.u32 683565275, %v66
    %v68 = vshll.u32 683565275, %v65
    %v69 = vshrl.u32 2475754826, %v66
    %v70 = vor.u32 %v68, %v69
    %v71 = vshll.u32 2475754826, %v65
    %v72 = vshrl.u32 2131351028, %v66
    %v73 = vor.u32 %v71, %v72
    %v74 = vshll.u32 2131351028, %v65
    %v75 = vshrl.u32 2102212464, %v66
    %v76 = vor.u32 %v74, %v75
    %v77 = vshll.u32 2102212464, %v65
    %v78 = vshrl.u32 920167782, %v66
    %v79 = vor.u32 %v77, %v78
    %v80 = vshll.u32 920167782, %v65
    %v81 = vshrl.u32 1326507024, %v66
    %v82 = vor.u32 %v80, %v81
    %vm83 = vcmp.lt.s32.totalorder %v64, 1
    %vm84 = vcmp.lt.s32.totalorder %v64, 2
    %vm85 = vcmp.lt.s32.totalorder %v64, 3
    %vm86 = vcmp.lt.s32.totalorder %v64, 4
    %v87 = vsel %vm83, %v67, %v70
    %v88 = vsel %vm86, %v76, 2102212464
    %v89 = vsel %vm85, %v73, %v88
    %v90 = vsel %vm84, %v87, %v89
    %v91 = vsel %vm83, %v70, %v73
    %v92 = vsel %vm86, %v79, 920167782
    %v93 = vsel %vm85, %v76, %v92
    %v94 = vsel %vm84, %v91, %v93
    %v95 = vsel %vm83, %v73, %v76
    %v96 = vsel %vm86, %v82, 1326507024
    %v97 = vsel %vm85, %v79, %v96
    %v98 = vsel %vm84, %v95, %v97
    %v99 = vshll.u32 %v59, 8
    %v100 = vand.u32 %v99, 65535
    %v101 = vshrl.u32 %v99, 16
    %v102 = vand.u32 %v98, 65535
    %v103 = vshrl.u32 %v98, 16
    %v104 = vmul.u32 %v100, %v102
    %v105 = vmul.u32 %v100, %v103
    %v106 = vmul.u32 %v101, %v102
    %v107 = vmul.u32 %v101, %v103
    %v108 = vshll.u32 %v105, 16
    %v109 = vshrl.u32 %v105, 16
    %v110 = vshll.u32 %v106, 16
    %v111 = vshrl.u32 %v106, 16
    %vm112 = vc.u32 %v104, %v108
    %v113 = vsel %vm112, 1, 0
    %v114 = vadd.s32 %v104, %v108
    %v115 = vadd.s32 %v107, %v113
    %vm116 = vc.u32 %v114, %v110
    %v117 = vsel %vm116, 1, 0
    %v118 = vadd.s32 %v114, %v110
    %v119 = vadd.s32 %v115, %v117
    %v120 = vadd.s32 %v119, %v109
    %v121 = vadd.s32 %v120, %v111
    %v122 = vand.u32 %v99, 65535
    %v123 = vshrl.u32 %v99, 16
    %v124 = vand.u32 %v94, 65535
    %v125 = vshrl.u32 %v94, 16
    %v126 = vmul.u32 %v122, %v124
    %v127 = vmul.u32 %v122, %v125
    %v128 = vmul.u32 %v123, %v124
    %v129 = vmul.u32 %v123, %v125
    %v130 = vshll.u32 %v127, 16
    %v131 = vshrl.u32 %v127, 16
    %v132 = vshll.u32 %v128, 16
    %v133 = vshrl.u32 %v128, 16
    %vm134 = vc.u32 %v126, %v130
    %v135 = vsel %vm134, 1, 0
    %v136 = vadd.s32 %v126, %v130
    %v137 = vadd.s32 %v129, %v135
    %vm138 = vc.u32 %v136, %v132
    %v139 = vsel %vm138, 1, 0
    %v140 = vadd.s32 %v136, %v132
    %v141 = vadd.s32 %v137, %v139
    %v142 = vadd.s32 %v141, %v131
    %v143 = vadd.s32 %v142, %v133
    %v144 = vmul.u32 %v99, %v90
    %v145 = vadd.s32 %v121, %v140
    %vm146 = vc.u32 %v121, %v140
    %v147 = vadd.s32 %v143, 1
    %v148 = vsel %vm146, %v147, %v143
    %v149 = vadd.s32 %v144, %v148
    %v150 = vadd.s32 %v149, 536870912
    %v151 = vshrl.u32 %v150, 30
    %v152 = vshll.u32 %v151, 30
    %v153 = vsub.s32 %v149, %v152
    %vm154 = vcmp.lt.s32.totalorder %v153, 0
    %v155 = vsub.s32 0, %v153
    %v156 = vsel %vm154, %v155, %v153
    %v157 = vclz %v156
    %v158 = vsub.s32 %v157, 2
    %vm159 = vcmp.gt.s32.totalorder 0, %v158
    %v160 = vsel %vm159, 0, %v158
    %v161 = vsub.s32 32, %v160
    %v162 = vshll.u32 %v153, %v160
    %v163 = vshrl.u32 %v145, %v161
    %v164 = vor.u32 %v162, %v163
    %v165 = vsub.s32 4294967266, %v160
    %v166 = vadd.s32 %v165, 127
    %v167 = vshll.u32 %v166, 23
    %v168 = vor.u32 4788187, %v167
    %v169 = vand.u32 2147483647, %v168
    %v171 = vcvt.s32.f32 %v164
    %v172 = vmul.f32 %v171, %v169
    %v173 = vxor.u32 %v172, 2147483648
    %v174 = vsel %vm53, %v173, %v172
    %v175 = vsub.s32 4, %v151
    %v176 = vsel %vm53, %v175, %v151
    %v177 = vsel %vm52, %v48, %v174
    %v178 = vsel %vm52, 0, %v176
    %v179 = vmul.f32 %v177, %v177
    %v180 = vmul.f32 %v179, -0.001358992
    %v181 = vadd.f32 %v180, 0.041655596
    %v182 = vmul.f32 %v179, %v181
    %v183 = vadd.f32 %v182, -0.4999988
    %v184 = vmul.f32 %v179, %v183
    %v185 = vadd.f32 1.0, %v184
    %v186 = vmul.f32 %v177, %v177
    %v187 = vmul.f32 %v186, -0.00019511016
    %v188 = vadd.f32 %v187, 0.008332121
    %v189 = vmul.f32 %v186, %v188
    %v190 = vadd.f32 %v189, -0.16666654
    %v191 = vmul.f32 %v186, %v190
    %v192 = vadd.f32 %v191, 1.0
    %v193 = vmul.f32 %v192, %v177
    %vm194 = vweird.f32 %v48
    %v195 = vand.u32 %v178, 3
    %vm196 = vcmp.lt.s32.totalorder %v195, 2
    %vm197 = vcmp.eq.s32.totalorder %v195, 0
    %v198 = vxor.u32 %v193, 2147483648
    %v199 = vsel %vm197, %v185, %v198
    %vm200 = vcmp.eq.s32.totalorder %v195, 2
    %v201 = vxor.u32 %v185, 2147483648
    %v202 = vsel %vm200, %v201, %v193
    %v203 = vsel %vm196, %v199, %v202
    %v204 = vsel %vm194, nan, %v203
    %v205 = vand.u32 2147483647, %v49
    %vm206 = vcmp.le.f32.partialorder %v205, 0.7853982
    %vm207 = vcmp.lt.s32.totalorder %v49, 0
    %v208 = vand.u32 %v49, 2139095040
    %v209 = vshrl.u32 %v208, 23
    %v210 = vsub.s32 %v209, 127
    %v211 = vand.u32 2147483647, %v49
    %v212 = vand.u32 %v211, 8388607
    %v213 = vor.u32 %v212, 8388608
    %v214 = vsub.s32 0, %v213
    %v215 = vadd.s32 %v210, 1
    %vm216 = vcmp.gt.s32.totalorder %v215, 0
    %v217 = vsel %vm216, %v215, 0
    %v218 = vshrl.u32 %v217, 5
    %v219 = vand.u32 %v217, 31
    %v220 = vsub.s32 32, %v219
    %v221 = vshrl.u32 683565275, %v220
    %v222 = vshll.u32 683565275, %v219
    %v223 = vshrl.u32 2475754826, %v220
    %v224 = vor.u32 %v222, %v223
    %v225 = vshll.u32 2475754826, %v219
    %v226 = vshrl.u32 2131351028, %v220
    %v227 = vor.u32 %v225, %v226
    %v228 = vshll.u32 2131351028, %v219
    %v229 = vshrl.u32 2102212464, %v220
    %v230 = vor.u32 %v228, %v229
    %v231 = vshll.u32 2102212464, %v219
    %v232 = vshrl.u32 920167782, %v220
    %v233 = vor.u32 %v231, %v232
    %v234 = vshll.u32 920167782, %v219
    %v235 = vshrl.u32 1326507024, %v220
    %v236 = vor.u32 %v234, %v235
    %vm237 = vcmp.lt.s32.totalorder %v218, 1
    %vm238 = vcmp.lt.s32.totalorder %v218, 2
    %vm239 = vcmp.lt.s32.totalorder %v218, 3
    %vm240 = vcmp.lt.s32.totalorder %v218, 4
    %v241 = vsel %vm237, %v221, %v224
    %v242 = vsel %vm240, %v230, 2102212464
    %v243 = vsel %vm239, %v227, %v242
    %v244 = vsel %vm238, %v241, %v243
    %v245 = vsel %vm237, %v224, %v227
    %v246 = vsel %vm240, %v233, 920167782
    %v247 = vsel %vm239, %v230, %v246
    %v248 = vsel %vm238, %v245, %v247
    %v249 = vsel %vm237, %v227, %v230
    %v250 = vsel %vm240, %v236, 1326507024
    %v251 = vsel %vm239, %v233, %v250
    %v252 = vsel %vm238, %v249, %v251
    %v253 = vshll.u32 %v213, 8
    %v254 = vand.u32 %v253, 65535
    %v255 = vshrl.u32 %v253, 16
    %v256 = vand.u32 %v252, 65535
    %v257 = vshrl.u32 %v252, 16
    %v258 = vmul.u32 %v254, %v256
    %v259 = vmul.u32 %v254, %v257
    %v260 = vmul.u32 %v255, %v256
    %v261 = vmul.u32 %v255, %v257
    %v262 = vshll.u32 %v259, 16
    %v263 = vshrl.u32 %v259, 16
    %v264 = vshll.u32 %v260, 16
    %v265 = vshrl.u32 %v260, 16
    %vm266 = vc.u32 %v258, %v262
    %v267 = vsel %vm266, 1, 0
    %v268 = vadd.s32 %v258, %v262
    %v269 = vadd.s32 %v261, %v267
    %vm270 = vc.u32 %v268, %v264
    %v271 = vsel %vm270, 1, 0
    %v272 = vadd.s32 %v268, %v264
    %v273 = vadd.s32 %v269, %v271
    %v274 = vadd.s32 %v273, %v263
    %v275 = vadd.s32 %v274, %v265
    %v276 = vand.u32 %v253, 65535
    %v277 = vshrl.u32 %v253, 16
    %v278 = vand.u32 %v248, 65535
    %v279 = vshrl.u32 %v248, 16
    %v280 = vmul.u32 %v276, %v278
    %v281 = vmul.u32 %v276, %v279
    %v282 = vmul.u32 %v277, %v278
    %v283 = vmul.u32 %v277, %v279
    %v284 = vshll.u32 %v281, 16
    %v285 = vshrl.u32 %v281, 16
    %v286 = vshll.u32 %v282, 16
    %v287 = vshrl.u32 %v282, 16
    %vm288 = vc.u32 %v280, %v284
    %v289 = vsel %vm288, 1, 0
    %v290 = vadd.s32 %v280, %v284
    %v291 = vadd.s32 %v283, %v289
    %vm292 = vc.u32 %v290, %v286
    %v293 = vsel %vm292, 1, 0
    %v294 = vadd.s32 %v290, %v286
    %v295 = vadd.s32 %v291, %v293
    %v296 = vadd.s32 %v295, %v285
    %v297 = vadd.s32 %v296, %v287
    %v298 = vmul.u32 %v253, %v244
    %v299 = vadd.s32 %v275, %v294
    %vm300 = vc.u32 %v275, %v294
    %v301 = vadd.s32 %v297, 1
    %v302 = vsel %vm300, %v301, %v297
    %v303 = vadd.s32 %v298, %v302
    %v304 = vadd.s32 %v303, 536870912
    %v305 = vshrl.u32 %v304, 30
    %v306 = vshll.u32 %v305, 30
    %v307 = vsub.s32 %v303, %v306
    %vm308 = vcmp.lt.s32.totalorder %v307, 0
    %v309 = vsub.s32 0, %v307
    %v310 = vsel %vm308, %v309, %v307
    %v311 = vclz %v310
    %v312 = vsub.s32 %v311, 2
    %vm313 = vcmp.gt.s32.totalorder 0, %v312
    %v314 = vsel %vm313, 0, %v312
    %v315 = vsub.s32 32, %v314
    %v316 = vshll.u32 %v307, %v314
    %v317 = vshrl.u32 %v299, %v315
    %v318 = vor.u32 %v316, %v317
    %v319 = vsub.s32 4294967266, %v314
    %v320 = vadd.s32 %v319, 127
    %v321 = vshll.u32 %v320, 23
    %v322 = vor.u32 4788187, %v321
    %v323 = vand.u32 2147483647, %v322
    %v325 = vcvt.s32.f32 %v318
    %v326 = vmul.f32 %v325, %v323
    %v327 = vxor.u32 %v326, 2147483648
    %v328 = vsel %vm207, %v327, %v326
    %v329 = vsub.s32 4, %v305
    %v330 = vsel %vm207, %v329, %v305
    %v331 = vsel %vm206, %v49, %v328
    %v332 = vsel %vm206, 0, %v330
    %v333 = vmul.f32 %v331, %v331
    %v334 = vmul.f32 %v333, -0.001358992
    %v335 = vadd.f32 %v334, 0.041655596
    %v336 = vmul.f32 %v333, %v335
    %v337 = vadd.f32 %v336, -0.4999988
    %v338 = vmul.f32 %v333, %v337
    %v339 = vadd.f32 1.0, %v338
    %v340 = vmul.f32 %v331, %v331
    %v341 = vmul.f32 %v340, -0.00019511016
    %v342 = vadd.f32 %v341, 0.008332121
    %v343 = vmul.f32 %v340, %v342
    %v344 = vadd.f32 %v343, -0.16666654
    %v345 = vmul.f32 %v340, %v344
    %v346 = vadd.f32 %v345, 1.0
    %v347 = vmul.f32 %v346, %v331
    %vm348 = vweird.f32 %v49
    %v349 = vand.u32 %v332, 3
    %vm350 = vcmp.lt.s32.totalorder %v349, 2
    %vm351 = vcmp.eq.s32.totalorder %v349, 0
    %v352 = vxor.u32 %v347, 2147483648
    %v353 = vsel %vm351, %v339, %v352
    %vm354 = vcmp.eq.s32.totalorder %v349, 2
    %v355 = vxor.u32 %v339, 2147483648
    %v356 = vsel %vm354, %v355, %v347
    %v357 = vsel %vm350, %v353, %v356
    %v358 = vsel %vm348, nan, %v357
    %v359 = vld [vmem:[#allocation5] sm:$0x3]
    %v360 = vand.u32 2147483647, %v48
    %vm361 = vcmp.le.f32.partialorder %v360, 0.7853982
    %vm362 = vcmp.lt.s32.totalorder %v48, 0
    %v363 = vand.u32 %v48, 2139095040
    %v364 = vshrl.u32 %v363, 23
    %v365 = vsub.s32 %v364, 127
    %v366 = vand.u32 2147483647, %v48
    %v367 = vand.u32 %v366, 8388607
    %v368 = vor.u32 %v367, 8388608
    %v369 = vsub.s32 0, %v368
    %v370 = vadd.s32 %v365, 1
    %vm371 = vcmp.gt.s32.totalorder %v370, 0
    %v372 = vsel %vm371, %v370, 0
    %v373 = vshrl.u32 %v372, 5
    %v374 = vand.u32 %v372, 31
    %v375 = vsub.s32 32, %v374
    %v376 = vshrl.u32 683565275, %v375
    %v377 = vshll.u32 683565275, %v374
    %v378 = vshrl.u32 2475754826, %v375
    %v379 = vor.u32 %v377, %v378
    %v380 = vshll.u32 2475754826, %v374
    %v381 = vshrl.u32 2131351028, %v375
    %v382 = vor.u32 %v380, %v381
    %v383 = vshll.u32 2131351028, %v374
    %v384 = vshrl.u32 2102212464, %v375
    %v385 = vor.u32 %v383, %v384
    %v386 = vshll.u32 2102212464, %v374
    %v387 = vshrl.u32 920167782, %v375
    %v388 = vor.u32 %v386, %v387
    %v389 = vshll.u32 920167782, %v374
    %v390 = vshrl.u32 1326507024, %v375
    %v391 = vor.u32 %v389, %v390
    %vm392 = vcmp.lt.s32.totalorder %v373, 1
    %vm393 = vcmp.lt.s32.totalorder %v373, 2
    %vm394 = vcmp.lt.s32.totalorder %v373, 3
    %vm395 = vcmp.lt.s32.totalorder %v373, 4
    %v396 = vsel %vm392, %v376, %v379
    %v397 = vsel %vm395, %v385, 2102212464
    %v398 = vsel %vm394, %v382, %v397
    %v399 = vsel %vm393, %v396, %v398
    %v400 = vsel %vm392, %v379, %v382
    %v401 = vsel %vm395, %v388, 920167782
    %v402 = vsel %vm394, %v385, %v401
    %v403 = vsel %vm393, %v400, %v402
    %v404 = vsel %vm392, %v382, %v385
    %v405 = vsel %vm395, %v391, 1326507024
    %v406 = vsel %vm394, %v388, %v405
    %v407 = vsel %vm393, %v404, %v406
    %v408 = vshll.u32 %v368, 8
    %v409 = vand.u32 %v408, 65535
    %v410 = vshrl.u32 %v408, 16
    %v411 = vand.u32 %v407, 65535
    %v412 = vshrl.u32 %v407, 16
    %v413 = vmul.u32 %v409, %v411
    %v414 = vmul.u32 %v409, %v412
    %v415 = vmul.u32 %v410, %v411
    %v416 = vmul.u32 %v410, %v412
    %v417 = vshll.u32 %v414, 16
    %v418 = vshrl.u32 %v414, 16
    %v419 = vshll.u32 %v415, 16
    %v420 = vshrl.u32 %v415, 16
    %vm421 = vc.u32 %v413, %v417
    %v422 = vsel %vm421, 1, 0
    %v423 = vadd.s32 %v413, %v417
    %v424 = vadd.s32 %v416, %v422
    %vm425 = vc.u32 %v423, %v419
    %v426 = vsel %vm425, 1, 0
    %v427 = vadd.s32 %v423, %v419
    %v428 = vadd.s32 %v424, %v426
    %v429 = vadd.s32 %v428, %v418
    %v430 = vadd.s32 %v429, %v420
    %v431 = vand.u32 %v408, 65535
    %v432 = vshrl.u32 %v408, 16
    %v433 = vand.u32 %v403, 65535
    %v434 = vshrl.u32 %v403, 16
    %v435 = vmul.u32 %v431, %v433
    %v436 = vmul.u32 %v431, %v434
    %v437 = vmul.u32 %v432, %v433
    %v438 = vmul.u32 %v432, %v434
    %v439 = vshll.u32 %v436, 16
    %v440 = vshrl.u32 %v436, 16
    %v441 = vshll.u32 %v437, 16
    %v442 = vshrl.u32 %v437, 16
    %vm443 = vc.u32 %v435, %v439
    %v444 = vsel %vm443, 1, 0
    %v445 = vadd.s32 %v435, %v439
    %v446 = vadd.s32 %v438, %v444
    %vm447 = vc.u32 %v445, %v441
    %v448 = vsel %vm447, 1, 0
    %v449 = vadd.s32 %v445, %v441
    %v450 = vadd.s32 %v446, %v448
    %v451 = vadd.s32 %v450, %v440
    %v452 = vadd.s32 %v451, %v442
    %v453 = vmul.u32 %v408, %v399
    %v454 = vadd.s32 %v430, %v449
    %vm455 = vc.u32 %v430, %v449
    %v456 = vadd.s32 %v452, 1
    %v457 = vsel %vm455, %v456, %v452
    %v458 = vadd.s32 %v453, %v457
    %v459 = vadd.s32 %v458, 536870912
    %v460 = vshrl.u32 %v459, 30
    %v461 = vshll.u32 %v460, 30
    %v462 = vsub.s32 %v458, %v461
    %vm463 = vcmp.lt.s32.totalorder %v462, 0
    %v464 = vsub.s32 0, %v462
    %v465 = vsel %vm463, %v464, %v462
    %v466 = vclz %v465
    %v467 = vsub.s32 %v466, 2
    %vm468 = vcmp.gt.s32.totalorder 0, %v467
    %v469 = vsel %vm468, 0, %v467
    %v470 = vsub.s32 32, %v469
    %v471 = vshll.u32 %v462, %v469
    %v472 = vshrl.u32 %v454, %v470
    %v473 = vor.u32 %v471, %v472
    %v474 = vsub.s32 4294967266, %v469
    %v475 = vadd.s32 %v474, 127
    %v476 = vshll.u32 %v475, 23
    %v477 = vor.u32 4788187, %v476
    %v478 = vand.u32 2147483647, %v477
    %v480 = vcvt.s32.f32 %v473
    %v481 = vmul.f32 %v480, %v478
    %v482 = vxor.u32 %v481, 2147483648
    %v483 = vsel %vm362, %v482, %v481
    %v484 = vsub.s32 4, %v460
    %v485 = vsel %vm362, %v484, %v460
    %v486 = vsel %vm361, %v48, %v483
    %v487 = vsel %vm361, 0, %v485
    %v488 = vmul.f32 %v486, %v486
    %v489 = vmul.f32 %v488, -0.001358992
    %v490 = vadd.f32 %v489, 0.041655596
    %v491 = vmul.f32 %v488, %v490
    %v492 = vadd.f32 %v491, -0.4999988
    %v493 = vmul.f32 %v488, %v492
    %v494 = vadd.f32 1.0, %v493
    %v495 = vmul.f32 %v486, %v486
    %v496 = vmul.f32 %v495, -0.00019511016
    %v497 = vadd.f32 %v496, 0.008332121
    %v498 = vmul.f32 %v495, %v497
    %v499 = vadd.f32 %v498, -0.16666654
    %v500 = vmul.f32 %v495, %v499
    %v501 = vadd.f32 %v500, 1.0
    %v502 = vmul.f32 %v501, %v486
    %vm503 = vweird.f32 %v48
    %v504 = vadd.s32 %v487, 3
    %v505 = vand.u32 %v504, 3
    %vm506 = vcmp.lt.s32.totalorder %v505, 2
    %vm507 = vcmp.eq.s32.totalorder %v505, 0
    %v508 = vxor.u32 %v502, 2147483648
    %v509 = vsel %vm507, %v494, %v508
    %vm510 = vcmp.eq.s32.totalorder %v505, 2
    %v511 = vxor.u32 %v494, 2147483648
    %v512 = vsel %vm510, %v511, %v502
    %v513 = vsel %vm506, %v509, %v512
    %v514 = vsel %vm503, nan, %v513
    %v515 = vand.u32 2147483647, %v49
    %vm516 = vcmp.le.f32.partialorder %v515, 0.7853982
    %vm517 = vcmp.lt.s32.totalorder %v49, 0
    %v518 = vand.u32 %v49, 2139095040
    %v519 = vshrl.u32 %v518, 23
    %v520 = vsub.s32 %v519, 127
    %v521 = vand.u32 2147483647, %v49
    %v522 = vand.u32 %v521, 8388607
    %v523 = vor.u32 %v522, 8388608
    %v524 = vsub.s32 0, %v523
    %v525 = vadd.s32 %v520, 1
    %vm526 = vcmp.gt.s32.totalorder %v525, 0
    %v527 = vsel %vm526, %v525, 0
    %v528 = vshrl.u32 %v527, 5
    %v529 = vand.u32 %v527, 31
    %v530 = vsub.s32 32, %v529
    %v531 = vshrl.u32 683565275, %v530
    %v532 = vshll.u32 683565275, %v529
    %v533 = vshrl.u32 2475754826, %v530
    %v534 = vor.u32 %v532, %v533
    %v535 = vshll.u32 2475754826, %v529
    %v536 = vshrl.u32 2131351028, %v530
    %v537 = vor.u32 %v535, %v536
    %v538 = vshll.u32 2131351028, %v529
    %v539 = vshrl.u32 2102212464, %v530
    %v540 = vor.u32 %v538, %v539
    %v541 = vshll.u32 2102212464, %v529
    %v542 = vshrl.u32 920167782, %v530
    %v543 = vor.u32 %v541, %v542
    %v544 = vshll.u32 920167782, %v529
    %v545 = vshrl.u32 1326507024, %v530
    %v546 = vor.u32 %v544, %v545
    %vm547 = vcmp.lt.s32.totalorder %v528, 1
    %vm548 = vcmp.lt.s32.totalorder %v528, 2
    %vm549 = vcmp.lt.s32.totalorder %v528, 3
    %vm550 = vcmp.lt.s32.totalorder %v528, 4
    %v551 = vsel %vm547, %v531, %v534
    %v552 = vsel %vm550, %v540, 2102212464
    %v553 = vsel %vm549, %v537, %v552
    %v554 = vsel %vm548, %v551, %v553
    %v555 = vsel %vm547, %v534, %v537
    %v556 = vsel %vm550, %v543, 920167782
    %v557 = vsel %vm549, %v540, %v556
    %v558 = vsel %vm548, %v555, %v557
    %v559 = vsel %vm547, %v537, %v540
    %v560 = vsel %vm550, %v546, 1326507024
    %v561 = vsel %vm549, %v543, %v560
    %v562 = vsel %vm548, %v559, %v561
    %v563 = vshll.u32 %v523, 8
    %v564 = vand.u32 %v563, 65535
    %v565 = vshrl.u32 %v563, 16
    %v566 = vand.u32 %v562, 65535
    %v567 = vshrl.u32 %v562, 16
    %v568 = vmul.u32 %v564, %v566
    %v569 = vmul.u32 %v564, %v567
    %v570 = vmul.u32 %v565, %v566
    %v571 = vmul.u32 %v565, %v567
    %v572 = vshll.u32 %v569, 16
    %v573 = vshrl.u32 %v569, 16
    %v574 = vshll.u32 %v570, 16
    %v575 = vshrl.u32 %v570, 16
    %vm576 = vc.u32 %v568, %v572
    %v577 = vsel %vm576, 1, 0
    %v578 = vadd.s32 %v568, %v572
    %v579 = vadd.s32 %v571, %v577
    %vm580 = vc.u32 %v578, %v574
    %v581 = vsel %vm580, 1, 0
    %v582 = vadd.s32 %v578, %v574
    %v583 = vadd.s32 %v579, %v581
    %v584 = vadd.s32 %v583, %v573
    %v585 = vadd.s32 %v584, %v575
    %v586 = vand.u32 %v563, 65535
    %v587 = vshrl.u32 %v563, 16
    %v588 = vand.u32 %v558, 65535
    %v589 = vshrl.u32 %v558, 16
    %v590 = vmul.u32 %v586, %v588
    %v591 = vmul.u32 %v586, %v589
    %v592 = vmul.u32 %v587, %v588
    %v593 = vmul.u32 %v587, %v589
    %v594 = vshll.u32 %v591, 16
    %v595 = vshrl.u32 %v591, 16
    %v596 = vshll.u32 %v592, 16
    %v597 = vshrl.u32 %v592, 16
    %vm598 = vc.u32 %v590, %v594
    %v599 = vsel %vm598, 1, 0
    %v600 = vadd.s32 %v590, %v594
    %v601 = vadd.s32 %v593, %v599
    %vm602 = vc.u32 %v600, %v596
    %v603 = vsel %vm602, 1, 0
    %v604 = vadd.s32 %v600, %v596
    %v605 = vadd.s32 %v601, %v603
    %v606 = vadd.s32 %v605, %v595
    %v607 = vadd.s32 %v606, %v597
    %v608 = vmul.u32 %v563, %v554
    %v609 = vadd.s32 %v585, %v604
    %vm610 = vc.u32 %v585, %v604
    %v611 = vadd.s32 %v607, 1
    %v612 = vsel %vm610, %v611, %v607
    %v613 = vadd.s32 %v608, %v612
    %v614 = vadd.s32 %v613, 536870912
    %v615 = vshrl.u32 %v614, 30
    %v616 = vshll.u32 %v615, 30
    %v617 = vsub.s32 %v613, %v616
    %vm618 = vcmp.lt.s32.totalorder %v617, 0
    %v619 = vsub.s32 0, %v617
    %v620 = vsel %vm618, %v619, %v617
    %v621 = vclz %v620
    %v622 = vsub.s32 %v621, 2
    %vm623 = vcmp.gt.s32.totalorder 0, %v622
    %v624 = vsel %vm623, 0, %v622
    %v625 = vsub.s32 32, %v624
    %v626 = vshll.u32 %v617, %v624
    %v627 = vshrl.u32 %v609, %v625
    %v628 = vor.u32 %v626, %v627
    %v629 = vsub.s32 4294967266, %v624
    %v630 = vadd.s32 %v629, 127
    %v631 = vshll.u32 %v630, 23
    %v632 = vor.u32 4788187, %v631
    %v633 = vand.u32 2147483647, %v632
    %v635 = vcvt.s32.f32 %v628
    %v636 = vmul.f32 %v635, %v633
    %v637 = vxor.u32 %v636, 2147483648
    %v638 = vsel %vm517, %v637, %v636
    %v639 = vsub.s32 4, %v615
    %v640 = vsel %vm517, %v639, %v615
    %v641 = vsel %vm516, %v49, %v638
    %v642 = vsel %vm516, 0, %v640
    %v643 = vmul.f32 %v641, %v641
    %v644 = vmul.f32 %v643, -0.001358992
    %v645 = vadd.f32 %v644, 0.041655596
    %v646 = vmul.f32 %v643, %v645
    %v647 = vadd.f32 %v646, -0.4999988
    %v648 = vmul.f32 %v643, %v647
    %v649 = vadd.f32 1.0, %v648
    %v650 = vmul.f32 %v641, %v641
    %v651 = vmul.f32 %v650, -0.00019511016
    %v652 = vadd.f32 %v651, 0.008332121
    %v653 = vmul.f32 %v650, %v652
    %v654 = vadd.f32 %v653, -0.16666654
    %v655 = vmul.f32 %v650, %v654
    %v656 = vadd.f32 %v655, 1.0
    %v657 = vmul.f32 %v656, %v641
    %vm658 = vweird.f32 %v49
    %v659 = vadd.s32 %v642, 3
    %v660 = vand.u32 %v659, 3
    %vm661 = vcmp.lt.s32.totalorder %v660, 2
    %vm662 = vcmp.eq.s32.totalorder %v660, 0
    %v663 = vxor.u32 %v657, 2147483648
    %v664 = vsel %vm662, %v649, %v663
    %vm665 = vcmp.eq.s32.totalorder %v660, 2
    %v666 = vxor.u32 %v649, 2147483648
    %v667 = vsel %vm665, %v666, %v657
    %v668 = vsel %vm661, %v664, %v667
    %v669 = vsel %vm658, nan, %v668
    %vm670 = vcmask 130048
    %v672 = vsel %vm670, %v359, 0
    %674 = vmatpush.msra.mxu0 0.0
    %675 = vmatpush.msra.mxu0 0.0
    %676 = vmatpush.msra.mxu0 0.0
    %677 = vmatpush.msra.mxu0 0.0
    %678 = vmatpush.msra.mxu0 0.0
    %679 = vmatpush.msra.mxu0 0.0
    %680 = vmatpush.msra.mxu0 0.0
    %681 = vmatpush.msra.mxu0 0.0
    %682 = vmatpush.msra.mxu0 0.0
    %683 = vmatpush.msra.mxu0 0.0
    %684 = vmatpush.msra.mxu0 0.0
    %685 = vmatpush.msra.mxu0 0.0
    %686 = vmatpush.msra.mxu0 0.0
    %687 = vmatpush.msra.mxu0 0.0
    %688 = vmatpush.msra.mxu0 %v669
    %689 = vmatpush.msra.mxu0 %v514
    %690 = vmatmul.f32.gmra.mxu0 %v672
    %v691 = vpop.f32.mrf.mxu0
    %v692 = vadd.f32 0.0, %v691
    %693 = vdwg.mxu0
    %v695 = vsel %vm670, %v50, 0
    %697 = vmatpush.msra.mxu0 0.0
    %698 = vmatpush.msra.mxu0 0.0
    %699 = vmatpush.msra.mxu0 0.0
    %700 = vmatpush.msra.mxu0 0.0
    %701 = vmatpush.msra.mxu0 0.0
    %702 = vmatpush.msra.mxu0 0.0
    %703 = vmatpush.msra.mxu0 0.0
    %704 = vmatpush.msra.mxu0 0.0
    %705 = vmatpush.msra.mxu0 0.0
    %706 = vmatpush.msra.mxu0 0.0
    %707 = vmatpush.msra.mxu0 0.0
    %708 = vmatpush.msra.mxu0 0.0
    %709 = vmatpush.msra.mxu0 0.0
    %710 = vmatpush.msra.mxu0 0.0
    %711 = vmatpush.msra.mxu0 %v358
    %712 = vmatpush.msra.mxu0 %v204
    %713 = vmatmul.f32.gmra.mxu0 %v695
    %v714 = vpop.f32.mrf.mxu0
    %v715 = vadd.f32 %v692, %v714
    %716 = vdwg.mxu0
    %v717 = vld [vmem:[%s3] sm:$0x3]
    %719 = vset.pattern.permute.xlu0 0
    %720 = vperm.xlu0 %719, %v717
    %v721 = vpop.permute.xlu0 %720
    %v723 = vadd.f32 %v715, %v721
    %724 = vst [vmem:[#allocation7] sm:$0x3] %v723
    // Predicated region
    $region26: #{tpu_custom_call.1} parent=1 // pred_check
      _
    $region27: #{tpu_custom_call.1} parent=1 // pred_check_branch
      %726 = sbr.rel (0) target = $region29
    $region28: #{tpu_custom_call.1} parent=1 // pred_region
      %728 = vsyncadd [#allocation4], 0
      %s730 = sshll.u32 [#allocation7], 4
      %s731 = int_to_ptr.vmem [resolvable:$true] %s730
      %s732 = sshll.u32 %s4, 4
      %s733 = int_to_ptr.hbm [resolvable:$true] %s732
      %735 = dma.vmem_to_hbm [thread:$0]  %s731, 32, %s733, [#allocation4]
    $region29: #{tpu_custom_call.1} parent=1 // pred_fallthru
      _
    // Predicated region
    $region30: #{tpu_custom_call.1} parent=1 // pred_check
      _
    $region31: #{tpu_custom_call.1} parent=1 // pred_check_branch
      %737 = sbr.rel (0) target = $region33
    $region32: #{tpu_custom_call.1} parent=1 // pred_region
      %739 = dma.done [#allocation4], 32
    $region33: #{tpu_custom_call.1} parent=1 // pred_fallthru
      _
    %740 = vsyncpa [#allocation3], 1
    %741 = vsyncpa [#allocation6], 1
    %742 = vsyncpa [#allocation4], 1

</llo_original>
